<compile_context>
chip_gen: v7x
topology: tpu7x:2x2x1
jax: 0.10.0
libtpu: 0.0.40
codegen_flags: <defaults>
</compile_context>

<pallas_src>
import jax
import jax.numpy as jnp
from jax.experimental import pallas as pl
from jax.experimental.pallas import tpu as pltpu


# ---------------------------------------------------------------------------
# Pallas kernel: masked "activation delta" update on one (TM, Fp) row tile.
# ---------------------------------------------------------------------------
def _activation_delta_kernel(delta_ref, mask_ref, x_ref, o_ref):
    # delta_ref: (1,)    scalar in SMEM
    # mask_ref : (1, Fp) float mask in VMEM (1.0 on activation columns), resident
    # x_ref    : (TM, Fp) feature tile in VMEM
    delta = delta_ref[0]
    apply_col = mask_ref[...] != 0.0            # (1, Fp) -> broadcasts over rows
    x = x_ref[...]
    updated = jnp.clip(x + delta, 0.0, 1.0)
    o_ref[...] = jnp.where(apply_col & (x != 0.0), updated, x)


def _round_up(x, m):
    return ((x + m - 1) // m) * m


def activation_delta_pallas(features, mask, delta, *, tm=512):
    """Apply the ActivationDelta update via a row-tiled Pallas call.

    features: [N, F] float32
    mask    : [1, F] float32 (1.0 where the column is an activation index)
    delta   : scalar float32
    """
    n, f = features.shape

    # Lane-dense padding: last dim -> multiple of 128, rows -> multiple of tile.
    fp = max(128, _round_up(f, 128))
    tm_eff = min(tm, _round_up(n, 8))           # multiple of 8, capped at ~512 rows
    n_pad = _round_up(n, tm_eff)

    x = features
    if (n_pad, fp) != (n, f):
        x = jnp.zeros((n_pad, fp), features.dtype).at[:n, :f].set(features)
    m = mask
    if fp != f:
        # padded columns get mask=0 -> pass-through (and padded rows are 0 -> x!=0 false)
        m = jnp.zeros((1, fp), mask.dtype).at[:, :f].set(mask)

    delta_arr = jnp.reshape(delta.astype(jnp.float32), (1,))
    grid = (n_pad // tm_eff,)

    out = pl.pallas_call(
        _activation_delta_kernel,
        out_shape=jax.ShapeDtypeStruct((n_pad, fp), features.dtype),
        grid=grid,
        in_specs=[
            pl.BlockSpec(memory_space=pltpu.SMEM),               # delta scalar (1,)
            pl.BlockSpec((1, fp), lambda i: (0, 0)),             # mask, resident
            pl.BlockSpec((tm_eff, fp), lambda i: (i, 0)),        # features row tile
        ],
        out_specs=pl.BlockSpec((tm_eff, fp), lambda i: (i, 0)),
        input_output_aliases={2: 0},                             # in-place on padded buffer
        compiler_params=pltpu.CompilerParams(
            dimension_semantics=("parallel",),                   # shard rows across TCs (v7x)
            vmem_limit_bytes=32 * 1024 * 1024,
        ),
    )(delta_arr, m, x)

    # Slice padded lanes/rows back off so downstream shapes are untouched.
    if (n_pad, fp) != (n, f):
        out = out[:n, :f]
    return out


# ---------------------------------------------------------------------------
# Glue: reproduce the activation-index selection of the PyTorch module.
# ---------------------------------------------------------------------------
def activation_indices(feat_version, num_obj_classes, num_feats):
    if feat_version == 1:
        return list(range(num_feats))
    elif feat_version == 2:
        num_obj_feats = num_obj_classes - 2
        num_obj_points = num_obj_feats * 2
        obj_acts_idx = num_obj_points + 1 + num_obj_points + 2 + 1
        return [0, num_obj_points + 1] + list(range(obj_acts_idx, num_feats))
    elif feat_version == 3:
        return [0, 3] + list(range(7, num_feats, 5))
    elif feat_version == 5:
        num_obj_feats = num_obj_classes - 2
        num_obj_points = num_obj_feats * 2
        obj_acts_idx = num_obj_points + 1 + num_obj_points + 2 + 1 + 1
        return [0, num_obj_points + 1] + list(range(obj_acts_idx, num_feats, 3))
    else:
        raise NotImplementedError(f"Unhandled version '{feat_version}'")


def build_mask(idxs, num_feats):
    m = jnp.zeros((1, num_feats), dtype=jnp.float32)
    return m.at[0, jnp.asarray(idxs, dtype=jnp.int32)].set(1.0)


class ActivationDeltaPallas:
    """JAX/Pallas counterpart of the torch ActivationDelta module."""

    def __init__(self, conf_delta, num_obj_classes, feat_version):
        self.conf_delta = float(conf_delta)
        self.num_obj_classes = num_obj_classes
        self.feat_version = feat_version

    def __call__(self, features, key):
        n, f = features.shape
        idxs = activation_indices(self.feat_version, self.num_obj_classes, f)
        mask = build_mask(idxs, f)
        # deterministic stand-in for random.uniform(-conf_delta, conf_delta)
        delta = jax.random.uniform(
            key, (), minval=-self.conf_delta, maxval=self.conf_delta,
            dtype=jnp.float32)
        return activation_delta_pallas(features, mask, delta), delta


# ---------------------------------------------------------------------------
# Reference (plain JAX, mirrors the numpy semantics of the torch forward)
# ---------------------------------------------------------------------------
def reference(features, idxs, delta):
    x = features
    cols = x[:, idxs]
    new_cols = jnp.where(cols != 0, jnp.clip(cols + delta, 0.0, 1.0), cols)
    return x.at[:, jnp.asarray(idxs)].set(new_cols)


if __name__ == "__main__":
    key = jax.random.PRNGKey(0)
    k_feat, k_delta, k_zero = jax.random.split(key, 3)

    # Module config (feat_version=2, num_obj_classes=4 -> activation idxs [0,5,12..15])
    conf_delta = 0.05
    num_obj_classes = 4
    feat_version = 2

    batch, num_feats = 8, 16  # small shapes; features are [N, F]
    features = jax.random.uniform(k_feat, (batch, num_feats), dtype=jnp.float32)
    # sprinkle some exact zeros so the "x != 0" branch is exercised
    zero_mask = jax.random.bernoulli(k_zero, p=0.3, shape=(batch, num_feats))
    features = jnp.where(zero_mask, 0.0, features)

    mod = ActivationDeltaPallas(conf_delta, num_obj_classes, feat_version)
    out, delta = mod(features, k_delta)
    out = jax.block_until_ready(out)

    idxs = activation_indices(feat_version, num_obj_classes, num_feats)
    ref = reference(features, idxs, delta)

    assert out.shape == features.shape
    assert jnp.allclose(out, ref, atol=1e-6), "Pallas kernel mismatch vs reference"
    print("KERNEL_OK")
</pallas_src>

<mosaic_0001>
module attributes {stable_mosaic.version = 11 : i64} {
  func.func @_activation_delta_kernel(%arg0: i32, %arg1: memref<1xf32, #tpu.memory_space<smem>>, %arg2: memref<1x128xf32, #tpu.memory_space<vmem>>, %arg3: memref<8x128xf32, #tpu.memory_space<vmem>>, %arg4: memref<8x128xf32, #tpu.memory_space<vmem>>) attributes {dimension_semantics = [#tpu.dimension_semantics<parallel>], iteration_bounds = array<i64: 1>, scalar_prefetch = 0 : i64, scratch_operands = 0 : i64, tpu.core_type = #tpu.core_type<tc>, window_params = [{transform_indices = @transform_0, window_bounds = array<i64: 1>}, {pipeline_mode = #tpu.pipeline_mode<synchronous>, transform_indices = @transform_1, window_bounds = array<i64: 1, 128>}, {transform_indices = @transform_2, window_bounds = array<i64: 8, 128>}, {transform_indices = @transform_3, window_bounds = array<i64: 8, 128>}]} {
    %c0 = arith.constant 0 : index
    %0 = memref.load %arg1[%c0] : memref<1xf32, #tpu.memory_space<smem>>
    %c0_0 = arith.constant 0 : index
    %c0_1 = arith.constant 0 : index
    %1 = vector.load %arg2[%c0_0, %c0_1] : memref<1x128xf32, #tpu.memory_space<vmem>>, vector<1x128xf32>
    %cst = arith.constant 0.000000e+00 : f32
    %2 = vector.broadcast %cst : f32 to vector<1x128xf32>
    %3 = arith.cmpf one, %1, %2 : vector<1x128xf32>
    %c0_2 = arith.constant 0 : index
    %c0_3 = arith.constant 0 : index
    %4 = vector.load %arg3[%c0_2, %c0_3] : memref<8x128xf32, #tpu.memory_space<vmem>>, vector<8x128xf32>
    %5 = vector.broadcast %0 : f32 to vector<8x128xf32>
    %6 = arith.addf %4, %5 : vector<8x128xf32>
    %cst_4 = arith.constant 0.000000e+00 : f32
    %cst_5 = arith.constant 1.000000e+00 : f32
    %7 = vector.broadcast %cst_4 : f32 to vector<8x128xf32>
    %8 = arith.maximumf %7, %6 : vector<8x128xf32>
    %9 = vector.broadcast %cst_5 : f32 to vector<8x128xf32>
    %10 = arith.minimumf %9, %8 : vector<8x128xf32>
    %cst_6 = arith.constant 0.000000e+00 : f32
    %11 = vector.broadcast %cst_6 : f32 to vector<8x128xf32>
    %12 = arith.cmpf one, %4, %11 : vector<8x128xf32>
    %13 = vector.broadcast %3 : vector<1x128xi1> to vector<8x128xi1>
    %14 = arith.andi %13, %12 : vector<8x128xi1>
    %15 = arith.select %14, %10, %4 : vector<8x128xi1>, vector<8x128xf32>
    %c0_7 = arith.constant 0 : index
    %c0_8 = arith.constant 0 : index
    %16 = vector.load %arg4[%c0_7, %c0_8] : memref<8x128xf32, #tpu.memory_space<vmem>>, vector<8x128xf32>
    tpu.vector_store %arg4[%c0_7, %c0_8], %15 {strides = array<i32>} : memref<8x128xf32, #tpu.memory_space<vmem>>, vector<8x128xf32>,
    return
  }
  func.func @transform_0(%arg0: i32) -> i32 {
    %c0_i32 = arith.constant 0 : i32
    %c0_i32_0 = arith.constant 0 : i32
    return %c0_i32 : i32
  }
  func.func @transform_1(%arg0: i32) -> (i32, i32) {
    %c0_i32 = arith.constant 0 : i32
    %c0_i32_0 = arith.constant 0 : i32
    %c0_i32_1 = arith.constant 0 : i32
    return %c0_i32, %c0_i32_0 : i32, i32
  }
  func.func @transform_2(%arg0: i32) -> (i32, i32) {
    %c0_i32 = arith.constant 0 : i32
    %c0_i32_0 = arith.constant 0 : i32
    return %arg0, %c0_i32 : i32, i32
  }
  func.func @transform_3(%arg0: i32) -> (i32, i32) {
    %c0_i32 = arith.constant 0 : i32
    %c0_i32_0 = arith.constant 0 : i32
    return %arg0, %c0_i32 : i32, i32
  }
}

</mosaic_0001>

<llo_original>
// kernel: tpu_custom_call.1
$region0: #{tpu_custom_call.1}
  #allocation0 [shape = 'u32[]', space=smem, size = 0x4, offset = 0x4, fixed_abs, tag = 'smem constant byte address 0x4 - core index']
  #allocation1 [shape = 'u32[144,128]{1,0:T(1,128)}', space=vmem, size = 0x12000, scoped, tag = 'internal scratch']
  #allocation2 [shape = 'f32[1]{0:T(128)S(6)}', space=smem, size = 0x200, scoped, tag = 'scoped memory for tpu_custom_call.1']
  %s0 = inlined_call_operand.<no memory space> [shape: f32[1], index: 0, kind: input, shape index: {}]
  %s1 = inlined_call_operand.vmem [shape: f32[1,128], index: 1, kind: input, shape index: {}]
  %s2 = inlined_call_operand.hbm [shape: f32[8,128], index: 2, kind: input, shape index: {}, may-alias: {2,3}]
  %s3 = inlined_call_operand.hbm [shape: f32[8,128], index: 3, kind: output, shape index: {}, may-alias: {2,3}]
  %s4 = sld [smem:[#allocation0]]
  $region26: #{tpu_custom_call.1} parent=0
    _
  %s6 = ssub.s32 1, %s4
  %s7 = scalar_select 0, %s6, %s4
  %8 = sst [smem:[#allocation2]] %s0
  $region1: #{tpu_custom_call.1} parent=0
    #allocation3 [shape = 'u8[4096]{0}', space=vmem, size = 0x1000, scoped, tag = 'input window, operand 2, single buffered']
    #allocation4 [shape = 's32[1]{0}', space=sflag, size = 0x4, scoped, tag = 'scoped memory for tpu_custom_call.1']
    #allocation5 [shape = 's32[1]{0}', space=sflag, size = 0x4, scoped, tag = 'scoped memory for tpu_custom_call.1']
    #allocation6 [shape = 'u8[4096]{0}', space=vmem, size = 0x1000, scoped, tag = 'output window, operand 0, single buffered']
    %9 = vsyncpa [#allocation4], 0
    %10 = vsyncpa [#allocation5], 0
    // Predicated region
    $region2: #{tpu_custom_call.1} parent=1 // pred_check
      _
    $region3: #{tpu_custom_call.1} parent=1 // pred_check_branch
      %12 = sbr.rel (0) target = $region5
    $region4: #{tpu_custom_call.1} parent=1 // pred_region
      _
    $region5: #{tpu_custom_call.1} parent=1 // pred_fallthru
      _
    // Predicated region
    $region6: #{tpu_custom_call.1} parent=1 // pred_check
      _
    $region7: #{tpu_custom_call.1} parent=1 // pred_check_branch
      %14 = sbr.rel (0) target = $region9
    $region8: #{tpu_custom_call.1} parent=1 // pred_region
      _
    $region9: #{tpu_custom_call.1} parent=1 // pred_fallthru
      _
    // Predicated region
    $region10: #{tpu_custom_call.1} parent=1 // pred_check
      _
    $region11: #{tpu_custom_call.1} parent=1 // pred_check_branch
      %16 = sbr.rel (0) target = $region13
    $region12: #{tpu_custom_call.1} parent=1 // pred_region
      %s18 = ssub.s32 128, 128
      %19 = vsyncadd [#allocation4], %s18
      %s21 = sshll.u32 [#allocation3], 4
      %s22 = int_to_ptr.vmem [resolvable:$true] %s21
      %24 = dma.hbm_to_vmem [thread:$0]  %s2, 128, %s22, [#allocation4]
    $region13: #{tpu_custom_call.1} parent=1 // pred_fallthru
      _
    // Predicated region
    $region14: #{tpu_custom_call.1} parent=1 // pred_check
      _
    $region15: #{tpu_custom_call.1} parent=1 // pred_check_branch
      %26 = sbr.rel (0) target = $region17
    $region16: #{tpu_custom_call.1} parent=1 // pred_region
      %27 = dma.done [#allocation4], 128
    $region17: #{tpu_custom_call.1} parent=1 // pred_fallthru
      _
    %s28 = sld [smem:[#allocation2]]
    %v29 = vld [vmem:[%s1] sm:$0x1]
    %vm30 = vcmp.ne.f32.partialorder %v29, 0.0
    %v31 = vld [vmem:[#allocation3] sm:$0xff]
    %v32 = vstv %s28
    %v33 = vadd.f32 %v31, %v32
    %v34 = vmax.f32 %v33, 0.0
    %v35 = vmin.f32 %v34, 1.0
    %vm36 = vcmp.ne.f32.partialorder %v31, 0.0
    %v37 = vsel %vm30, 1, 0
    %v38 = vlaneseq
    %v39 = vshrl.u32 %v38, 7
    %v40 = vsub.s32 0, %v39
    %v41 = vrot.slane %v37, %v40
    %vm42 = vcmp.eq.s32.totalorder %v41, 1
    %vm43 = vmand %vm42, %vm36
    %v44 = vsel %vm43, %v35, %v31
    %45 = vst [vmem:[#allocation6] sm:$0xff] %v44
    // Predicated region
    $region18: #{tpu_custom_call.1} parent=1 // pred_check
      _
    $region19: #{tpu_custom_call.1} parent=1 // pred_check_branch
      %47 = sbr.rel (0) target = $region21
    $region20: #{tpu_custom_call.1} parent=1 // pred_region
      %s49 = ssub.s32 128, 128
      %50 = vsyncadd [#allocation5], %s49
      %s52 = sshll.u32 [#allocation6], 4
      %s53 = int_to_ptr.vmem [resolvable:$true] %s52
      %55 = dma.vmem_to_hbm [thread:$0]  %s53, 128, %s3, [#allocation5]
    $region21: #{tpu_custom_call.1} parent=1 // pred_fallthru
      _
    // Predicated region
    $region22: #{tpu_custom_call.1} parent=1 // pred_check
      _
    $region23: #{tpu_custom_call.1} parent=1 // pred_check_branch
      %57 = sbr.rel (0) target = $region25
    $region24: #{tpu_custom_call.1} parent=1 // pred_region
      %58 = dma.done [#allocation5], 128
    $region25: #{tpu_custom_call.1} parent=1 // pred_fallthru
      _
    %59 = vsyncpa [#allocation4], 1
    %60 = vsyncpa [#allocation5], 1

</llo_original>
